<compile_context>
chip_gen: v7x
topology: tpu7x:2x2x1
jax: 0.10.0
libtpu: 0.0.40
codegen_flags: <defaults>
</compile_context>

<pallas_src>
import math

import jax
import jax.numpy as jnp
from jax.experimental import pallas as pl
from jax.experimental.pallas import tpu as pltpu


def _drop_path_kernel(x_ref, m_ref, o_ref):
    # (bn, bf) * (bn, 1) -> (bn, bf): per-sample scalar broadcast multiply (VPU only).
    o_ref[...] = x_ref[...] * m_ref[...]


# Soft per-pipeline-stage budget (x tile + mask column). Double-buffered inputs +
# outputs total ~4x this (~8 MiB) -> fits v5e's 16 MiB scoped default and leaves
# ample headroom on v6e/v7x (32 MiB scoped), so no vmem_limit_bytes override needed.
_MAX_TILE_BYTES = 2 * 1024 * 1024


def _round_up(x, m):
    return -(-x // m) * m


def _pick_tiles(n, f, itemsize):
    """Pick (bn, bf, grid_n, grid_f): lane-dense feature tiles, batch tile grown to
    fill ~_MAX_TILE_BYTES of (lane-padded) VMEM per stage, >=2 grid steps if possible."""
    base = max(8, 32 // max(1, itemsize))  # sublane pack: 8 f32 / 16 bf16 / 32 int8
    row_budget = max(128, _MAX_TILE_BYTES // (itemsize * base))  # elems/row at `base` rows

    if f % 128 == 0:
        # Largest 128-multiple divisor of f within the budget -> exact, lane-dense tiles.
        groups = f // 128
        max_groups = min(groups, max(1, row_budget // 128))
        gsel = 1
        for g in range(1, max_groups + 1):
            if groups % g == 0:
                gsel = g
        bf, grid_f = gsel * 128, groups // gsel
    elif f <= row_budget:
        # Full extent: exact but not lane-dense (masked stores); padding F in the
        # wrapper would cost a whole extra HBM pass, so we accept it.
        bf, grid_f = f, 1
    else:
        # Huge, misaligned feature dim: 128-aligned tile + ragged (masked) last block.
        bf = max(128, (row_budget // 128) * 128)
        grid_f = -(-f // bf)

    # Grow the batch tile to fill the budget; +128 lanes accounts for the (bn, 1)
    # mask column, which is lane-padded to 128 in VMEM.
    stage_row_bytes = itemsize * (_round_up(bf, 128) + 128)
    bn = max(1, min(n, _MAX_TILE_BYTES // stage_row_bytes))
    if bn >= base:
        bn -= bn % base          # keep the sublane dim (8,128)-legal
    elif n >= base:
        bn = base                # tiny overshoot of the soft budget; still << scoped VMEM
    else:
        bn = n                   # tiny batch: full-extent sublane block is always legal
    grid_n = -(-n // bn)

    # v7x megacore: keep >= 2 parallel grid steps whenever a legal split exists.
    if grid_n * grid_f < 2:
        half = (bn // 2) - ((bn // 2) % base)
        if half >= base:
            bn = half
            grid_n = -(-n // bn)

    return bn, bf, grid_n, grid_f


def drop_path(x, drop_prob, *, key=None):
    """Pallas DropPath.

    x: (N, ...) array. Each sample i is multiplied by an independent
    Bernoulli(1 - drop_prob) 0/1 value (no 1/keep_prob rescale, matching the
    reference module). drop_prob == 0 returns x unchanged. Pass a fresh `key`
    every training step; skip the call entirely at eval time.
    """
    drop_prob = float(drop_prob)
    if drop_prob <= 0.0:
        return x
    if key is None:
        # NOTE: a fixed default key drops the same samples every call; callers
        # should thread their own RNG key during training.
        key = jax.random.PRNGKey(0)

    n = x.shape[0]
    f = int(math.prod(x.shape[1:])) if x.ndim > 1 else 1
    keep_prob = 1.0 - drop_prob

    # Per-sample keep mask drawn outside the kernel (only N values).
    mask = jax.random.bernoulli(key, keep_prob, (n, 1)).astype(x.dtype)
    x2 = x.reshape(n, f)

    itemsize = jnp.dtype(x.dtype).itemsize
    bn, bf, grid_n, grid_f = _pick_tiles(n, f, itemsize)

    out2 = pl.pallas_call(
        _drop_path_kernel,
        out_shape=jax.ShapeDtypeStruct((n, f), x.dtype),
        grid=(grid_n, grid_f),  # feature axis innermost -> mask block re-fetched only per-i
        in_specs=[
            pl.BlockSpec((bn, bf), lambda i, j: (i, j)),  # lane-dense x tile
            pl.BlockSpec((bn, 1), lambda i, j: (i, 0)),   # per-sample mask column
        ],
        out_specs=pl.BlockSpec((bn, bf), lambda i, j: (i, j)),
        input_output_aliases={0: 0},  # output reuses x2's HBM buffer when donated
        compiler_params=pltpu.CompilerParams(
            dimension_semantics=("parallel", "parallel"),
        ),
    )(x2, mask)
    return out2.reshape(x.shape)


if __name__ == "__main__":
    key = jax.random.PRNGKey(0)
    kx, kmask = jax.random.split(key)

    # 3-D input, as implied by the (N, 1, 1) mask in the reference module.
    N, C, L = 2, 8, 128
    x = jax.random.normal(kx, (N, C, L), dtype=jnp.float32)

    # drop_prob > 0: per-sample mask multiply done in the Pallas kernel.
    out = jax.block_until_ready(drop_path(x, drop_prob=0.5, key=kmask))
    assert out.shape == x.shape
    for i in range(N):
        kept = bool(jnp.allclose(out[i], x[i]))
        dropped = bool(jnp.allclose(out[i], 0.0))
        assert kept or dropped, f"sample {i} is neither kept nor dropped"

    # drop_prob == 0: identity, same as the reference short-circuit.
    out0 = jax.block_until_ready(drop_path(x, drop_prob=0.0))
    assert bool(jnp.allclose(out0, x))

    # Ragged batch (N not a multiple of the sublane base) + 128-aligned features:
    # exercises the ceil-div grid with a masked last block and the >=2-step split.
    x_r = jax.random.normal(kx, (20, 4, 32), dtype=jnp.float32)
    out_r = jax.block_until_ready(drop_path(x_r, drop_prob=0.3, key=kmask))
    for i in range(20):
        kept = bool(jnp.allclose(out_r[i], x_r[i]))
        dropped = bool(jnp.allclose(out_r[i], 0.0))
        assert kept or dropped, f"ragged sample {i} is neither kept nor dropped"

    # Non-128-aligned feature dim + tiny batch: full-extent fallback path.
    x_s = jax.random.normal(kx, (3, 4, 16), dtype=jnp.float32)
    out_s = jax.block_until_ready(drop_path(x_s, drop_prob=0.3, key=kmask))
    for i in range(3):
        kept = bool(jnp.allclose(out_s[i], x_s[i]))
        dropped = bool(jnp.allclose(out_s[i], 0.0))
        assert kept or dropped, f"small sample {i} is neither kept nor dropped"

    print("KERNEL_OK")
</pallas_src>

<mosaic_0001>
module attributes {stable_mosaic.version = 11 : i64} {
  func.func @_drop_path_kernel(%arg0: i32, %arg1: i32, %arg2: memref<2x1024xf32, #tpu.memory_space<vmem>>, %arg3: memref<2x1xf32, #tpu.memory_space<vmem>>, %arg4: memref<2x1024xf32, #tpu.memory_space<vmem>>) attributes {dimension_semantics = [#tpu.dimension_semantics<parallel>, #tpu.dimension_semantics<parallel>], iteration_bounds = array<i64: 1, 1>, scalar_prefetch = 0 : i64, scratch_operands = 0 : i64, tpu.core_type = #tpu.core_type<tc>, window_params = [{transform_indices = @transform_0, window_bounds = array<i64: 2, 1024>}, {transform_indices = @transform_1, window_bounds = array<i64: 2, 1>}, {transform_indices = @transform_2, window_bounds = array<i64: 2, 1024>}]} {
    %c0 = arith.constant 0 : index
    %c0_0 = arith.constant 0 : index
    %0 = vector.load %arg2[%c0, %c0_0] : memref<2x1024xf32, #tpu.memory_space<vmem>>, vector<2x1024xf32>
    %c0_1 = arith.constant 0 : index
    %c0_2 = arith.constant 0 : index
    %1 = vector.load %arg3[%c0_1, %c0_2] : memref<2x1xf32, #tpu.memory_space<vmem>>, vector<2x1xf32>
    %2 = vector.broadcast %1 : vector<2x1xf32> to vector<2x1024xf32>
    %3 = arith.mulf %0, %2 : vector<2x1024xf32>
    %c0_3 = arith.constant 0 : index
    %c0_4 = arith.constant 0 : index
    %4 = vector.load %arg4[%c0_3, %c0_4] : memref<2x1024xf32, #tpu.memory_space<vmem>>, vector<2x1024xf32>
    tpu.vector_store %arg4[%c0_3, %c0_4], %3 {strides = array<i32>} : memref<2x1024xf32, #tpu.memory_space<vmem>>, vector<2x1024xf32>,
    return
  }
  func.func @transform_0(%arg0: i32, %arg1: i32) -> (i32, i32) {
    %c0_i32 = arith.constant 0 : i32
    return %arg0, %arg1 : i32, i32
  }
  func.func @transform_1(%arg0: i32, %arg1: i32) -> (i32, i32) {
    %c0_i32 = arith.constant 0 : i32
    %c0_i32_0 = arith.constant 0 : i32
    return %arg0, %c0_i32 : i32, i32
  }
  func.func @transform_2(%arg0: i32, %arg1: i32) -> (i32, i32) {
    %c0_i32 = arith.constant 0 : i32
    return %arg0, %arg1 : i32, i32
  }
}

</mosaic_0001>

<llo_original>
// kernel: tpu_custom_call.1
$region0: #{tpu_custom_call.1}
  #allocation0 [shape = 'u32[]', space=smem, size = 0x4, offset = 0x4, fixed_abs, tag = 'smem constant byte address 0x4 - core index']
  #allocation1 [shape = 'u32[144,128]{1,0:T(1,128)}', space=vmem, size = 0x12000, scoped, tag = 'internal scratch']
  %s0 = inlined_call_operand.hbm [shape: f32[2,1024], index: 0, kind: input, shape index: {}, may-alias: {0,2}]
  %s1 = inlined_call_operand.vmem [shape: f32[2,1], index: 1, kind: input, shape index: {}]
  %s2 = inlined_call_operand.hbm [shape: f32[2,1024], index: 2, kind: output, shape index: {}, may-alias: {0,2}]
  %s3 = sld [smem:[#allocation0]]
  $region22: #{tpu_custom_call.1} parent=0
    _
  %s5 = ssub.s32 1, %s3
  %s6 = scalar_select 0, %s5, %s3
  $region1: #{tpu_custom_call.1} parent=0
    #allocation2 [shape = 'u8[8192]{0}', space=vmem, size = 0x2000, scoped, tag = 'input window, operand 0, single buffered']
    #allocation3 [shape = 's32[1]{0}', space=sflag, size = 0x4, scoped, tag = 'scoped memory for tpu_custom_call.1']
    #allocation4 [shape = 's32[1]{0}', space=sflag, size = 0x4, scoped, tag = 'scoped memory for tpu_custom_call.1']
    #allocation5 [shape = 'u8[8192]{0}', space=vmem, size = 0x2000, scoped, tag = 'output window, operand 0, single buffered']
    %7 = vsyncpa [#allocation3], 0
    %8 = vsyncpa [#allocation4], 0
    // Predicated region
    $region2: #{tpu_custom_call.1} parent=1 // pred_check
      _
    $region3: #{tpu_custom_call.1} parent=1 // pred_check_branch
      %10 = sbr.rel (0) target = $region5
    $region4: #{tpu_custom_call.1} parent=1 // pred_region
      %s12 = ssub.s32 256, 256
      %13 = vsyncadd [#allocation3], %s12
      %s15 = sshll.u32 [#allocation2], 4
      %s16 = int_to_ptr.vmem [resolvable:$true] %s15
      %18 = dma.hbm_to_vmem [thread:$0]  %s0, 256, %s16, [#allocation3]
    $region5: #{tpu_custom_call.1} parent=1 // pred_fallthru
      _
    // Predicated region
    $region6: #{tpu_custom_call.1} parent=1 // pred_check
      _
    $region7: #{tpu_custom_call.1} parent=1 // pred_check_branch
      %20 = sbr.rel (0) target = $region9
    $region8: #{tpu_custom_call.1} parent=1 // pred_region
      _
    $region9: #{tpu_custom_call.1} parent=1 // pred_fallthru
      _
    // Predicated region
    $region10: #{tpu_custom_call.1} parent=1 // pred_check
      _
    $region11: #{tpu_custom_call.1} parent=1 // pred_check_branch
      %22 = sbr.rel (0) target = $region13
    $region12: #{tpu_custom_call.1} parent=1 // pred_region
      %23 = dma.done [#allocation3], 256
    $region13: #{tpu_custom_call.1} parent=1 // pred_fallthru
      _
    %v24 = vld [vmem:[#allocation2] sm:$0xff]
    %v25 = vld [vmem:[#allocation2 + $0x8] sm:$0xff]
    %v26 = vld [vmem:[%s1] sm:$0x3]
    %28 = vset.pattern.permute.xlu0 0
    %29 = vperm.xlu0 %28, %v26
    %v30 = vpop.permute.xlu0 %29
    %v32 = vunpack.c.l.s4 269488144
    %v33 = vunpack.c.0.s8 %v32
    %v34 = vlaneseq
    %v35 = vshrl.u32 %v34, 7
    %v36 = vsub.s32 %v33, %v35
    %v37 = vrot.slane %v30, %v36
    %v39 = vmul.f32 %v24, %v37
    %v40 = vmul.f32 %v25, %v37
    %41 = vst [vmem:[#allocation5] sm:$0xff] %v39
    %42 = vst [vmem:[#allocation5 + $0x8] sm:$0xff] %v40
    // Predicated region
    $region14: #{tpu_custom_call.1} parent=1 // pred_check
      _
    $region15: #{tpu_custom_call.1} parent=1 // pred_check_branch
      %44 = sbr.rel (0) target = $region17
    $region16: #{tpu_custom_call.1} parent=1 // pred_region
      %s46 = ssub.s32 256, 256
      %47 = vsyncadd [#allocation4], %s46
      %s49 = sshll.u32 [#allocation5], 4
      %s50 = int_to_ptr.vmem [resolvable:$true] %s49
      %52 = dma.vmem_to_hbm [thread:$0]  %s50, 256, %s2, [#allocation4]
    $region17: #{tpu_custom_call.1} parent=1 // pred_fallthru
      _
    // Predicated region
    $region18: #{tpu_custom_call.1} parent=1 // pred_check
      _
    $region19: #{tpu_custom_call.1} parent=1 // pred_check_branch
      %54 = sbr.rel (0) target = $region21
    $region20: #{tpu_custom_call.1} parent=1 // pred_region
      %55 = dma.done [#allocation4], 256
    $region21: #{tpu_custom_call.1} parent=1 // pred_fallthru
      _
    %56 = vsyncpa [#allocation3], 1
    %57 = vsyncpa [#allocation4], 1

</llo_original>
